<compile_context>
chip_gen: v7x
topology: tpu7x:2x2x1
jax: 0.10.0
libtpu: 0.0.40
codegen_flags: <defaults>
</compile_context>

<pallas_src>
import jax
import jax.numpy as jnp
from jax.experimental import pallas as pl
from jax.experimental.pallas import tpu as pltpu

_WB = 128  # one vreg lane width; width of the in-tile reversal


def _flip_kernel(x_ref, rev_ref, o_ref):
    """Reverse the lanes of one (TR, k*128) f32 block, bit-exactly.

    Sub-tile s of the input (lanes [s*128, (s+1)*128)) is lane-reversed on the
    MXU and stored to sub-tile k-1-s of the output block; combined with the
    mirrored output block index in the out_spec this yields the full hflip.
    """
    k = x_ref.shape[-1] // _WB
    rev = rev_ref[...]                              # (128, 128) bf16 anti-identity
    for s in range(k):                              # static unroll (k <= 8)
        x = x_ref[:, s * _WB:(s + 1) * _WB]         # (TR, 128) f32

        # Exact 3-way bf16 split: x == hi + (mid + lo) in f32 arithmetic.
        hi = x.astype(jnp.bfloat16)
        r1 = x - hi.astype(jnp.float32)
        mid = r1.astype(jnp.bfloat16)
        lo = (r1 - mid.astype(jnp.float32)).astype(jnp.bfloat16)

        # Permute each bf16 component on the MXU (exact: every output lane is
        # one 1.0-weighted bf16 term accumulated in f32), then re-sum in the
        # same order as the decomposition -> bit-exact flipped f32.
        f_hi = jnp.dot(hi, rev, preferred_element_type=jnp.float32)
        f_mid = jnp.dot(mid, rev, preferred_element_type=jnp.float32)
        f_lo = jnp.dot(lo, rev, preferred_element_type=jnp.float32)
        o_ref[:, (k - 1 - s) * _WB:(k - s) * _WB] = f_hi + (f_mid + f_lo)


def _round_up(x, m):
    return (x + m - 1) // m * m


def _choose_tiles(rows, n_w128):
    """Pick (lane sub-tiles per W block, row tile, padded row count)."""
    # As many 128-lane sub-tiles per block as evenly divide the padded width.
    for k in (8, 4, 2, 1):
        if n_w128 % k == 0:
            break
    # Target ~1 MiB f32 per block: tr * (k*128) * 4 bytes <= 1 MiB.
    max_tr = max(8, (1 << 18) // (k * _WB))
    rows8 = _round_up(rows, 8)
    if rows8 <= max_tr:
        return k, rows8, rows8
    # Prefer an exact multiple-of-8 divisor in [max_tr/2, max_tr] (no row pad).
    for t in range(max_tr, max_tr // 2 - 1, -8):
        if rows8 % t == 0:
            return k, t, rows8
    # Otherwise pad rows up to a multiple of max_tr (bounded, small waste).
    return k, max_tr, _round_up(rows8, max_tr)


def _hflip_via_kernel(x):
    """jnp.flip(x, axis=-1) computed by the Pallas kernel (float data)."""
    shape, dtype = x.shape, x.dtype
    w = shape[-1]
    x2 = x.astype(jnp.float32).reshape(-1, w)
    rows = x2.shape[0]

    pad_w = (-w) % _WB
    wp = w + pad_w
    n_w128 = wp // _WB
    k, tr, rows_p = _choose_tiles(rows, n_w128)
    pad_r = rows_p - rows
    if pad_w or pad_r:
        # Left-pad W so the real data lands in the first `w` output columns
        # after the flip (output stores stay 128-lane dense); bottom-pad rows
        # to a multiple of the row tile.
        x2 = jnp.pad(x2, ((0, pad_r), (pad_w, 0)))

    wblk = k * _WB
    n_wblk = n_w128 // k
    n_r = rows_p // tr

    # 128x128 bf16 anti-identity: (x @ rev)[:, j] == x[:, 127 - j].
    rev = jnp.flip(jnp.eye(_WB, dtype=jnp.bfloat16), axis=1)

    y2 = pl.pallas_call(
        _flip_kernel,
        out_shape=jax.ShapeDtypeStruct((rows_p, wp), jnp.float32),
        grid=(n_r, n_wblk),
        in_specs=[
            pl.BlockSpec((tr, wblk), lambda r, c: (r, c)),
            pl.BlockSpec((_WB, _WB), lambda r, c: (0, 0)),
        ],
        # Mirrored output block index + in-block lane reversal == full hflip.
        out_specs=pl.BlockSpec((tr, wblk), lambda r, c: (r, n_wblk - 1 - c)),
        compiler_params=pltpu.CompilerParams(
            dimension_semantics=("parallel", "parallel")),
        cost_estimate=pl.CostEstimate(
            flops=2 * 3 * rows_p * wp * _WB,          # 3 bf16 MXU passes / tile
            transcendentals=0,
            bytes_accessed=2 * rows_p * wp * 4 + _WB * _WB * 2),
    )(x2, rev)

    if pad_w or pad_r:
        y2 = y2[:rows, :w]
    return y2.reshape(shape).astype(dtype)


def _hflip_mask(mask):
    """Horizontal flip of an integer segmentation mask (exact for |v| < 2**24)."""
    # TODO(synk): integer-exact path for full-range int32 payloads (class-id
    # masks are far below 2**24, so this f32 round-trip is exact here).
    flipped = _hflip_via_kernel(mask.astype(jnp.float32))
    return jnp.round(flipped).astype(mask.dtype)


def segmentation_horizontal_flip(key, img, mask, p=0.5):
    """Pallas/JAX equivalent of SegmentationHorizontalFlip(p)(img, mask).

    Returns ((img_out, mask_out), did_flip).  The flip decision is hoisted
    into lax.cond so the no-flip branch costs nothing (no kernel launch,
    no extra HBM traffic).
    """
    do_flip = jax.random.uniform(key, ()) < p

    def _flip(i, m):
        return _hflip_via_kernel(i), _hflip_mask(m)

    def _keep(i, m):
        return i, m

    return jax.lax.cond(do_flip, _flip, _keep, img, mask), do_flip


if __name__ == "__main__":
    key = jax.random.PRNGKey(0)
    k_img, k_mask, k_flip = jax.random.split(key, 3)

    B, C, H, W = 2, 4, 16, 16
    img = jax.random.normal(k_img, (B, C, H, W), dtype=jnp.float32)
    mask = jax.random.randint(k_mask, (B, H, W), 0, 21, dtype=jnp.int32)

    # --- exercise the flip kernel deterministically (always-flip path) ---
    f_img = _hflip_via_kernel(img)
    f_mask = _hflip_mask(mask)
    jax.block_until_ready((f_img, f_mask))
    assert f_img.shape == img.shape and f_img.dtype == img.dtype
    assert f_mask.shape == mask.shape and f_mask.dtype == mask.dtype
    assert jnp.array_equal(f_img, jnp.flip(img, axis=-1))
    assert jnp.array_equal(f_mask, jnp.flip(mask, axis=-1))

    # --- exercise the multi-sub-tile paths (W padding, k > 1, block mirroring) ---
    img_pad = jax.random.normal(k_img, (1, 3, 8, 200), dtype=jnp.float32)   # pad 200->256, k=2
    img_wide = jax.random.normal(k_mask, (1, 1, 8, 2048), dtype=jnp.float32)  # k=8, 2 W blocks
    f_pad = _hflip_via_kernel(img_pad)
    f_wide = _hflip_via_kernel(img_wide)
    jax.block_until_ready((f_pad, f_wide))
    assert jnp.array_equal(f_pad, jnp.flip(img_pad, axis=-1))
    assert jnp.array_equal(f_wide, jnp.flip(img_wide, axis=-1))

    # --- public API: both branches of the hoisted lax.cond ---
    flip_fn = jax.jit(segmentation_horizontal_flip)
    (i1, m1), d1 = flip_fn(k_flip, img, mask, p=1.0)   # always flips
    (i0, m0), d0 = flip_fn(k_flip, img, mask, p=0.0)   # never flips
    (ir, mr), dr = flip_fn(k_flip, img, mask, p=0.5)   # module default
    jax.block_until_ready((i1, m1, i0, m0, ir, mr))

    assert bool(d1) and not bool(d0)
    assert jnp.array_equal(i1, jnp.flip(img, axis=-1))
    assert jnp.array_equal(m1, jnp.flip(mask, axis=-1))
    assert jnp.array_equal(i0, img) and jnp.array_equal(m0, mask)
    exp_i = jnp.flip(img, axis=-1) if bool(dr) else img
    exp_m = jnp.flip(mask, axis=-1) if bool(dr) else mask
    assert jnp.array_equal(ir, exp_i) and jnp.array_equal(mr, exp_m)

    print("KERNEL_OK")
</pallas_src>

<mosaic_0001>
module attributes {stable_mosaic.version = 11 : i64} {
  func.func @_flip_kernel(%arg0: i32, %arg1: i32, %arg2: memref<128x128xf32, #tpu.memory_space<vmem>>, %arg3: memref<128x128xbf16, #tpu.memory_space<vmem>>, %arg4: memref<128x128xf32, #tpu.memory_space<vmem>>) attributes {dimension_semantics = [#tpu.dimension_semantics<parallel>, #tpu.dimension_semantics<parallel>], iteration_bounds = array<i64: 1, 1>, scalar_prefetch = 0 : i64, scratch_operands = 0 : i64, tpu.core_type = #tpu.core_type<tc>, window_params = [{transform_indices = @transform_0, window_bounds = array<i64: 128, 128>}, {pipeline_mode = #tpu.pipeline_mode<synchronous>, transform_indices = @transform_1, window_bounds = array<i64: 128, 128>}, {transform_indices = @transform_2, window_bounds = array<i64: 128, 128>}]} {
    %c0 = arith.constant 0 : index
    %c0_0 = arith.constant 0 : index
    %0 = vector.load %arg3[%c0, %c0_0] : memref<128x128xbf16, #tpu.memory_space<vmem>>, vector<128x128xbf16>
    %c0_1 = arith.constant 0 : index
    %c0_2 = arith.constant 0 : index
    %1 = vector.load %arg2[%c0_1, %c0_2] : memref<128x128xf32, #tpu.memory_space<vmem>>, vector<128x128xf32>
    %2 = arith.truncf %1 : vector<128x128xf32> to vector<128x128xbf16>
    %3 = arith.extf %2 : vector<128x128xbf16> to vector<128x128xf32>
    %4 = arith.subf %1, %3 : vector<128x128xf32>
    %5 = arith.truncf %4 : vector<128x128xf32> to vector<128x128xbf16>
    %6 = arith.extf %5 : vector<128x128xbf16> to vector<128x128xf32>
    %7 = arith.subf %4, %6 : vector<128x128xf32>
    %8 = arith.truncf %7 : vector<128x128xf32> to vector<128x128xbf16>
    %cst = arith.constant dense<0.000000e+00> : vector<128x128xf32>
    %9 = tpu.matmul %2, %0, %cst {dimension_numbers = #tpu.dot_dimension_numbers<[1], [0], [0], [1], [0, 0, 1, 1], [], []>} : vector<128x128xbf16>, vector<128x128xbf16>, vector<128x128xf32> -> vector<128x128xf32>
    %cst_3 = arith.constant dense<0.000000e+00> : vector<128x128xf32>
    %10 = tpu.matmul %5, %0, %cst_3 {dimension_numbers = #tpu.dot_dimension_numbers<[1], [0], [0], [1], [0, 0, 1, 1], [], []>} : vector<128x128xbf16>, vector<128x128xbf16>, vector<128x128xf32> -> vector<128x128xf32>
    %cst_4 = arith.constant dense<0.000000e+00> : vector<128x128xf32>
    %11 = tpu.matmul %8, %0, %cst_4 {dimension_numbers = #tpu.dot_dimension_numbers<[1], [0], [0], [1], [0, 0, 1, 1], [], []>} : vector<128x128xbf16>, vector<128x128xbf16>, vector<128x128xf32> -> vector<128x128xf32>
    %12 = arith.addf %10, %11 : vector<128x128xf32>
    %13 = arith.addf %9, %12 : vector<128x128xf32>
    %c0_5 = arith.constant 0 : index
    %c0_6 = arith.constant 0 : index
    %14 = vector.load %arg4[%c0_5, %c0_6] : memref<128x128xf32, #tpu.memory_space<vmem>>, vector<128x128xf32>
    tpu.vector_store %arg4[%c0_5, %c0_6], %13 {strides = array<i32>} : memref<128x128xf32, #tpu.memory_space<vmem>>, vector<128x128xf32>,
    return
  }
  func.func @transform_0(%arg0: i32, %arg1: i32) -> (i32, i32) {
    %c0_i32 = arith.constant 0 : i32
    return %arg0, %arg1 : i32, i32
  }
  func.func @transform_1(%arg0: i32, %arg1: i32) -> (i32, i32) {
    %c0_i32 = arith.constant 0 : i32
    %c0_i32_0 = arith.constant 0 : i32
    %c0_i32_1 = arith.constant 0 : i32
    return %c0_i32, %c0_i32_0 : i32, i32
  }
  func.func @transform_2(%arg0: i32, %arg1: i32) -> (i32, i32) {
    %c0_i32 = arith.constant 0 : i32
    %0 = arith.subi %c0_i32, %arg1 : i32
    %c0_i32_0 = arith.constant 0 : i32
    return %arg0, %0 : i32, i32
  }
}

</mosaic_0001>

<llo_original>
// kernel: tpu_custom_call.1
$region0: #{tpu_custom_call.1}
  #allocation0 [shape = 'u32[]', space=smem, size = 0x4, offset = 0x4, fixed_abs, tag = 'smem constant byte address 0x4 - core index']
  #allocation1 [shape = 'u32[144,128]{1,0:T(1,128)}', space=vmem, size = 0x12000, scoped, tag = 'internal scratch']
  %s0 = inlined_call_operand.hbm [shape: f32[128,128], index: 0, kind: input, shape index: {}]
  %s1 = inlined_call_operand.hbm [shape: bf16[128,128], index: 1, kind: input, shape index: {}]
  %s2 = inlined_call_operand.hbm [shape: f32[128,128], index: 2, kind: output, shape index: {}]
  %s3 = sld [smem:[#allocation0]]
  $region26: #{tpu_custom_call.1} parent=0
    _
  %s5 = ssub.s32 1, %s3
  %s6 = scalar_select 0, %s5, %s3
  $region1: #{tpu_custom_call.1} parent=0
    #allocation2 [shape = 'u8[65536]{0}', space=vmem, size = 0x10000, scoped, tag = 'input window, operand 0, single buffered']
    #allocation3 [shape = 's32[1]{0}', space=sflag, size = 0x4, scoped, tag = 'scoped memory for tpu_custom_call.1']
    #allocation4 [shape = 's32[1]{0}', space=sflag, size = 0x4, scoped, tag = 'scoped memory for tpu_custom_call.1']
    #allocation5 [shape = 'u8[32768]{0}', space=vmem, size = 0x8000, scoped, tag = 'input window, operand 1, single buffered']
    #allocation6 [shape = 's32[1]{0}', space=sflag, size = 0x4, scoped, tag = 'scoped memory for tpu_custom_call.1']
    #allocation7 [shape = 'u8[65536]{0}', space=vmem, size = 0x10000, scoped, tag = 'output window, operand 0, single buffered']
    %7 = vsyncpa [#allocation3], 0
    %8 = vsyncpa [#allocation6], 0
    %9 = vsyncpa [#allocation4], 0
    // Predicated region
    $region2: #{tpu_custom_call.1} parent=1 // pred_check
      _
    $region3: #{tpu_custom_call.1} parent=1 // pred_check_branch
      %11 = sbr.rel (0) target = $region5
    $region4: #{tpu_custom_call.1} parent=1 // pred_region
      %s13 = ssub.s32 2048, 2048
      %14 = vsyncadd [#allocation3], %s13
      %s15 = sshll.u32 [#allocation2], 4
      %s16 = int_to_ptr.vmem [resolvable:$true] %s15
      %21 = dma.hbm_to_vmem [thread:$0]  %s0, 2048, %s16, [#allocation3], 128, 128, 8
    $region5: #{tpu_custom_call.1} parent=1 // pred_fallthru
      _
    // Predicated region
    $region6: #{tpu_custom_call.1} parent=1 // pred_check
      _
    $region7: #{tpu_custom_call.1} parent=1 // pred_check_branch
      %23 = sbr.rel (0) target = $region9
    $region8: #{tpu_custom_call.1} parent=1 // pred_region
      %s25 = ssub.s32 1024, 1024
      %26 = vsyncadd [#allocation6], %s25
      %s27 = sshll.u32 [#allocation5], 4
      %s28 = int_to_ptr.vmem [resolvable:$true] %s27
      %33 = dma.hbm_to_vmem [thread:$0]  %s1, 1024, %s28, [#allocation6], 64, 64, 4
    $region9: #{tpu_custom_call.1} parent=1 // pred_fallthru
      _
    // Predicated region
    $region10: #{tpu_custom_call.1} parent=1 // pred_check
      _
    $region11: #{tpu_custom_call.1} parent=1 // pred_check_branch
      %35 = sbr.rel (0) target = $region13
    $region12: #{tpu_custom_call.1} parent=1 // pred_region
      %36 = dma.done [#allocation3], 2048
    $region13: #{tpu_custom_call.1} parent=1 // pred_fallthru
      _
    // Predicated region
    $region14: #{tpu_custom_call.1} parent=1 // pred_check
      _
    $region15: #{tpu_custom_call.1} parent=1 // pred_check_branch
      %38 = sbr.rel (0) target = $region17
    $region16: #{tpu_custom_call.1} parent=1 // pred_region
      %39 = dma.done [#allocation6], 1024
    $region17: #{tpu_custom_call.1} parent=1 // pred_fallthru
      _
    %s40 = ssub.s32 0, 0
    %v42 = vld [vmem:[#allocation5] sm:$0xf]
    %v43 = vld [vmem:[#allocation5 + $0x4] sm:$0xf]
    %v44 = vld [vmem:[#allocation5 + $0x8] sm:$0xf]
    %v45 = vld [vmem:[#allocation5 + $0xc] sm:$0xf]
    %v46 = vld [vmem:[#allocation5 + $0x10] sm:$0xf]
    %v47 = vld [vmem:[#allocation5 + $0x14] sm:$0xf]
    %v48 = vld [vmem:[#allocation5 + $0x18] sm:$0xf]
    %v49 = vld [vmem:[#allocation5 + $0x1c] sm:$0xf]
    %v50 = vld [vmem:[#allocation5 + $0x20] sm:$0xf]
    %v51 = vld [vmem:[#allocation5 + $0x24] sm:$0xf]
    %v52 = vld [vmem:[#allocation5 + $0x28] sm:$0xf]
    %v53 = vld [vmem:[#allocation5 + $0x2c] sm:$0xf]
    %v54 = vld [vmem:[#allocation5 + $0x30] sm:$0xf]
    %v55 = vld [vmem:[#allocation5 + $0x34] sm:$0xf]
    %v56 = vld [vmem:[#allocation5 + $0x38] sm:$0xf]
    %v57 = vld [vmem:[#allocation5 + $0x3c] sm:$0xf]
    %v58 = vld [vmem:[#allocation2] sm:$0xff]
    %v59 = vld [vmem:[#allocation2 + $0x8] sm:$0xff]
    %v60 = vld [vmem:[#allocation2 + $0x10] sm:$0xff]
    %v61 = vld [vmem:[#allocation2 + $0x18] sm:$0xff]
    %v62 = vld [vmem:[#allocation2 + $0x20] sm:$0xff]
    %v63 = vld [vmem:[#allocation2 + $0x28] sm:$0xff]
    %v64 = vld [vmem:[#allocation2 + $0x30] sm:$0xff]
    %v65 = vld [vmem:[#allocation2 + $0x38] sm:$0xff]
    %v66 = vld [vmem:[#allocation2 + $0x40] sm:$0xff]
    %v67 = vld [vmem:[#allocation2 + $0x48] sm:$0xff]
    %v68 = vld [vmem:[#allocation2 + $0x50] sm:$0xff]
    %v69 = vld [vmem:[#allocation2 + $0x58] sm:$0xff]
    %v70 = vld [vmem:[#allocation2 + $0x60] sm:$0xff]
    %v71 = vld [vmem:[#allocation2 + $0x68] sm:$0xff]
    %v72 = vld [vmem:[#allocation2 + $0x70] sm:$0xff]
    %v73 = vld [vmem:[#allocation2 + $0x78] sm:$0xff]
    %v74 = vpack.c.bf16 %v59, %v58
    %v75 = vpack.c.bf16 %v61, %v60
    %v76 = vpack.c.bf16 %v63, %v62
    %v77 = vpack.c.bf16 %v65, %v64
    %v78 = vpack.c.bf16 %v67, %v66
    %v79 = vpack.c.bf16 %v69, %v68
    %v80 = vpack.c.bf16 %v71, %v70
    %v81 = vpack.c.bf16 %v73, %v72
    %v82 = vunpack.c.l.bf16 %v74
    %v83 = vunpack.c.h.bf16 %v74
    %v84 = vunpack.c.l.bf16 %v75
    %v85 = vunpack.c.h.bf16 %v75
    %v86 = vunpack.c.l.bf16 %v76
    %v87 = vunpack.c.h.bf16 %v76
    %v88 = vunpack.c.l.bf16 %v77
    %v89 = vunpack.c.h.bf16 %v77
    %v90 = vunpack.c.l.bf16 %v78
    %v91 = vunpack.c.h.bf16 %v78
    %v92 = vunpack.c.l.bf16 %v79
    %v93 = vunpack.c.h.bf16 %v79
    %v94 = vunpack.c.l.bf16 %v80
    %v95 = vunpack.c.h.bf16 %v80
    %v96 = vunpack.c.l.bf16 %v81
    %v97 = vunpack.c.h.bf16 %v81
    %v98 = vsub.f32 %v58, %v82
    %v99 = vsub.f32 %v59, %v83
    %v100 = vsub.f32 %v60, %v84
    %v101 = vsub.f32 %v61, %v85
    %v102 = vsub.f32 %v62, %v86
    %v103 = vsub.f32 %v63, %v87
    %v104 = vsub.f32 %v64, %v88
    %v105 = vsub.f32 %v65, %v89
    %v106 = vsub.f32 %v66, %v90
    %v107 = vsub.f32 %v67, %v91
    %v108 = vsub.f32 %v68, %v92
    %v109 = vsub.f32 %v69, %v93
    %v110 = vsub.f32 %v70, %v94
    %v111 = vsub.f32 %v71, %v95
    %v112 = vsub.f32 %v72, %v96
    %v113 = vsub.f32 %v73, %v97
    %v114 = vpack.c.bf16 %v99, %v98
    %v115 = vpack.c.bf16 %v101, %v100
    %v116 = vpack.c.bf16 %v103, %v102
    %v117 = vpack.c.bf16 %v105, %v104
    %v118 = vpack.c.bf16 %v107, %v106
    %v119 = vpack.c.bf16 %v109, %v108
    %v120 = vpack.c.bf16 %v111, %v110
    %v121 = vpack.c.bf16 %v113, %v112
    %v122 = vunpack.c.l.bf16 %v114
    %v123 = vunpack.c.h.bf16 %v114
    %v124 = vunpack.c.l.bf16 %v115
    %v125 = vunpack.c.h.bf16 %v115
    %v126 = vunpack.c.l.bf16 %v116
    %v127 = vunpack.c.h.bf16 %v116
    %v128 = vunpack.c.l.bf16 %v117
    %v129 = vunpack.c.h.bf16 %v117
    %v130 = vunpack.c.l.bf16 %v118
    %v131 = vunpack.c.h.bf16 %v118
    %v132 = vunpack.c.l.bf16 %v119
    %v133 = vunpack.c.h.bf16 %v119
    %v134 = vunpack.c.l.bf16 %v120
    %v135 = vunpack.c.h.bf16 %v120
    %v136 = vunpack.c.l.bf16 %v121
    %v137 = vunpack.c.h.bf16 %v121
    %v138 = vsub.f32 %v98, %v122
    %v139 = vsub.f32 %v99, %v123
    %v140 = vsub.f32 %v100, %v124
    %v141 = vsub.f32 %v101, %v125
    %v142 = vsub.f32 %v102, %v126
    %v143 = vsub.f32 %v103, %v127
    %v144 = vsub.f32 %v104, %v128
    %v145 = vsub.f32 %v105, %v129
    %v146 = vsub.f32 %v106, %v130
    %v147 = vsub.f32 %v107, %v131
    %v148 = vsub.f32 %v108, %v132
    %v149 = vsub.f32 %v109, %v133
    %v150 = vsub.f32 %v110, %v134
    %v151 = vsub.f32 %v111, %v135
    %v152 = vsub.f32 %v112, %v136
    %v153 = vsub.f32 %v113, %v137
    %v154 = vpack.c.bf16 %v139, %v138
    %v155 = vpack.c.bf16 %v141, %v140
    %v156 = vpack.c.bf16 %v143, %v142
    %v157 = vpack.c.bf16 %v145, %v144
    %v158 = vpack.c.bf16 %v147, %v146
    %v159 = vpack.c.bf16 %v149, %v148
    %v160 = vpack.c.bf16 %v151, %v150
    %v161 = vpack.c.bf16 %v153, %v152
    %v178 = vunpack.c.l.b16 %v42
    %v179 = vunpack.c.l.b16 %v43
    %v180 = vunpack.c.l.b16 %v44
    %v181 = vunpack.c.l.b16 %v45
    %v182 = vunpack.c.l.b16 %v46
    %v183 = vunpack.c.l.b16 %v47
    %v184 = vunpack.c.l.b16 %v48
    %v185 = vunpack.c.l.b16 %v49
    %v186 = vunpack.c.l.b16 %v50
    %v187 = vunpack.c.l.b16 %v51
    %v188 = vunpack.c.l.b16 %v52
    %v189 = vunpack.c.l.b16 %v53
    %v190 = vunpack.c.l.b16 %v54
    %v191 = vunpack.c.l.b16 %v55
    %v192 = vunpack.c.l.b16 %v56
    %v193 = vunpack.c.l.b16 %v57
    %v194 = vpack.c.b16 %v179, %v178
    %v195 = vpack.c.b16 %v181, %v180
    %v196 = vpack.c.b16 %v183, %v182
    %v197 = vpack.c.b16 %v185, %v184
    %v198 = vpack.c.b16 %v187, %v186
    %v199 = vpack.c.b16 %v189, %v188
    %v200 = vpack.c.b16 %v191, %v190
    %v201 = vpack.c.b16 %v193, %v192
    %210 = vmatprep.subr.bf16.mxu0 0
    %211 = vmatpush1.bf16.msra.mxu0 %v194
    %212 = vmatprep.subr.bf16.mxu0 0
    %213 = vmatpush1.bf16.msra.mxu0 %v195
    %214 = vmatprep.subr.bf16.mxu0 0
    %215 = vmatpush1.bf16.msra.mxu0 %v196
    %216 = vmatprep.subr.bf16.mxu0 0
    %217 = vmatpush1.bf16.msra.mxu0 %v197
    %218 = vmatprep.subr.bf16.mxu0 0
    %219 = vmatpush1.bf16.msra.mxu0 %v198
    %220 = vmatprep.subr.bf16.mxu0 0
    %221 = vmatpush1.bf16.msra.mxu0 %v199
    %222 = vmatprep.subr.bf16.mxu0 0
    %223 = vmatpush1.bf16.msra.mxu0 %v200
    %224 = vmatprep.subr.bf16.mxu0 0
    %225 = vmatpush1.bf16.msra.mxu0 %v201
    %226 = vmatprep.subr.bf16.mxu0 0
    %227 = vmatpush1.bf16.msra.mxu0 0
    %228 = vmatprep.subr.bf16.mxu0 0
    %229 = vmatpush1.bf16.msra.mxu0 0
    %230 = vmatprep.subr.bf16.mxu0 0
    %231 = vmatpush1.bf16.msra.mxu0 0
    %232 = vmatprep.subr.bf16.mxu0 0
    %233 = vmatpush1.bf16.msra.mxu0 0
    %234 = vmatprep.subr.bf16.mxu0 0
    %235 = vmatpush1.bf16.msra.mxu0 0
    %236 = vmatprep.subr.bf16.mxu0 0
    %237 = vmatpush1.bf16.msra.mxu0 0
    %238 = vmatprep.subr.bf16.mxu0 0
    %239 = vmatpush1.bf16.msra.mxu0 0
    %240 = vmatprep.subr.bf16.mxu0 0
    %241 = vmatpush1.bf16.msra.mxu0 0
    %242 = vmatprep.mubr.bf16.mxu0 0
    %243 = vmatmul.mubr.bf16.gmra.mrb[0].mxu0 %v154
    %v244 = vpop.f32.mrb[0].mxu0
    %v245 = vadd.f32 0.0, %v244
    %v246 = vpop.f32.mrb[0].mxu0
    %v247 = vpop.f32.mrb[0].mxu0
    %v248 = vadd.f32 0.0, %v247
    %v249 = vpop.f32.mrb[0].mxu0
    %250 = vmatprep.mubr.bf16.mxu0 0
    %251 = vmatmul.mubr.bf16.gmra.mrb[0].mxu0 %v155
    %v252 = vpop.f32.mrb[0].mxu0
    %v253 = vadd.f32 0.0, %v252
    %v254 = vpop.f32.mrb[0].mxu0
    %v255 = vpop.f32.mrb[0].mxu0
    %v256 = vadd.f32 0.0, %v255
    %v257 = vpop.f32.mrb[0].mxu0
    %258 = vmatprep.mubr.bf16.mxu0 0
    %259 = vmatmul.mubr.bf16.gmra.mrb[0].mxu0 %v156
    %v260 = vpop.f32.mrb[0].mxu0
    %v261 = vadd.f32 0.0, %v260
    %v262 = vpop.f32.mrb[0].mxu0
    %v263 = vpop.f32.mrb[0].mxu0
    %v264 = vadd.f32 0.0, %v263
    %v265 = vpop.f32.mrb[0].mxu0
    %266 = vmatprep.mubr.bf16.mxu0 0
    %267 = vmatmul.mubr.bf16.gmra.mrb[0].mxu0 %v157
    %v268 = vpop.f32.mrb[0].mxu0
    %v269 = vadd.f32 0.0, %v268
    %v270 = vpop.f32.mrb[0].mxu0
    %v271 = vpop.f32.mrb[0].mxu0
    %v272 = vadd.f32 0.0, %v271
    %v273 = vpop.f32.mrb[0].mxu0
    %274 = vmatprep.mubr.bf16.mxu0 0
    %275 = vmatmul.mubr.bf16.gmra.mrb[0].mxu0 %v158
    %v276 = vpop.f32.mrb[0].mxu0
    %v277 = vadd.f32 0.0, %v276
    %v278 = vpop.f32.mrb[0].mxu0
    %v279 = vpop.f32.mrb[0].mxu0
    %v280 = vadd.f32 0.0, %v279
    %v281 = vpop.f32.mrb[0].mxu0
    %282 = vmatprep.mubr.bf16.mxu0 0
    %283 = vmatmul.mubr.bf16.gmra.mrb[0].mxu0 %v159
    %v284 = vpop.f32.mrb[0].mxu0
    %v285 = vadd.f32 0.0, %v284
    %v286 = vpop.f32.mrb[0].mxu0
    %v287 = vpop.f32.mrb[0].mxu0
    %v288 = vadd.f32 0.0, %v287
    %v289 = vpop.f32.mrb[0].mxu0
    %290 = vmatprep.mubr.bf16.mxu0 0
    %291 = vmatmul.mubr.bf16.gmra.mrb[0].mxu0 %v160
    %v292 = vpop.f32.mrb[0].mxu0
    %v293 = vadd.f32 0.0, %v292
    %v294 = vpop.f32.mrb[0].mxu0
    %v295 = vpop.f32.mrb[0].mxu0
    %v296 = vadd.f32 0.0, %v295
    %v297 = vpop.f32.mrb[0].mxu0
    %298 = vmatprep.mubr.bf16.mxu0 0
    %299 = vmatmul.mubr.bf16.gmra.mrb[0].mxu0 %v161
    %v300 = vpop.f32.mrb[0].mxu0
    %v301 = vadd.f32 0.0, %v300
    %v302 = vpop.f32.mrb[0].mxu0
    %v303 = vpop.f32.mrb[0].mxu0
    %v304 = vadd.f32 0.0, %v303
    %v305 = vpop.f32.mrb[0].mxu0
    %306 = vdwg.mxu0
    %307 = vmatprep.subr.bf16.mxu0 0
    %308 = vmatpush1.bf16.msra.mxu0 %v194
    %309 = vmatprep.subr.bf16.mxu0 0
    %310 = vmatpush1.bf16.msra.mxu0 %v195
    %311 = vmatprep.subr.bf16.mxu0 0
    %312 = vmatpush1.bf16.msra.mxu0 %v196
    %313 = vmatprep.subr.bf16.mxu0 0
    %314 = vmatpush1.bf16.msra.mxu0 %v197
    %315 = vmatprep.subr.bf16.mxu0 0
    %316 = vmatpush1.bf16.msra.mxu0 %v198
    %317 = vmatprep.subr.bf16.mxu0 0
    %318 = vmatpush1.bf16.msra.mxu0 %v199
    %319 = vmatprep.subr.bf16.mxu0 0
    %320 = vmatpush1.bf16.msra.mxu0 %v200
    %321 = vmatprep.subr.bf16.mxu0 0
    %322 = vmatpush1.bf16.msra.mxu0 %v201
    %323 = vmatprep.subr.bf16.mxu0 0
    %324 = vmatpush1.bf16.msra.mxu0 0
    %325 = vmatprep.subr.bf16.mxu0 0
    %326 = vmatpush1.bf16.msra.mxu0 0
    %327 = vmatprep.subr.bf16.mxu0 0
    %328 = vmatpush1.bf16.msra.mxu0 0
    %329 = vmatprep.subr.bf16.mxu0 0
    %330 = vmatpush1.bf16.msra.mxu0 0
    %331 = vmatprep.subr.bf16.mxu0 0
    %332 = vmatpush1.bf16.msra.mxu0 0
    %333 = vmatprep.subr.bf16.mxu0 0
    %334 = vmatpush1.bf16.msra.mxu0 0
    %335 = vmatprep.subr.bf16.mxu0 0
    %336 = vmatpush1.bf16.msra.mxu0 0
    %337 = vmatprep.subr.bf16.mxu0 0
    %338 = vmatpush1.bf16.msra.mxu0 0
    %339 = vmatprep.mubr.bf16.mxu0 0
    %340 = vmatmul.mubr.bf16.gmra.mrb[0].mxu0 %v114
    %v341 = vpop.f32.mrb[0].mxu0
    %v342 = vadd.f32 %v245, %v341
    %v343 = vpop.f32.mrb[0].mxu0
    %v344 = vpop.f32.mrb[0].mxu0
    %v345 = vadd.f32 %v248, %v344
    %v346 = vpop.f32.mrb[0].mxu0
    %347 = vmatprep.mubr.bf16.mxu0 0
    %348 = vmatmul.mubr.bf16.gmra.mrb[0].mxu0 %v115
    %v349 = vpop.f32.mrb[0].mxu0
    %v350 = vadd.f32 %v253, %v349
    %v351 = vpop.f32.mrb[0].mxu0
    %v352 = vpop.f32.mrb[0].mxu0
    %v353 = vadd.f32 %v256, %v352
    %v354 = vpop.f32.mrb[0].mxu0
    %355 = vmatprep.mubr.bf16.mxu0 0
    %356 = vmatmul.mubr.bf16.gmra.mrb[0].mxu0 %v116
    %v357 = vpop.f32.mrb[0].mxu0
    %v358 = vadd.f32 %v261, %v357
    %v359 = vpop.f32.mrb[0].mxu0
    %v360 = vpop.f32.mrb[0].mxu0
    %v361 = vadd.f32 %v264, %v360
    %v362 = vpop.f32.mrb[0].mxu0
    %363 = vmatprep.mubr.bf16.mxu0 0
    %364 = vmatmul.mubr.bf16.gmra.mrb[0].mxu0 %v117
    %v365 = vpop.f32.mrb[0].mxu0
    %v366 = vadd.f32 %v269, %v365
    %v367 = vpop.f32.mrb[0].mxu0
    %v368 = vpop.f32.mrb[0].mxu0
    %v369 = vadd.f32 %v272, %v368
    %v370 = vpop.f32.mrb[0].mxu0
    %371 = vmatprep.mubr.bf16.mxu0 0
    %372 = vmatmul.mubr.bf16.gmra.mrb[0].mxu0 %v118
    %v373 = vpop.f32.mrb[0].mxu0
    %v374 = vadd.f32 %v277, %v373
    %v375 = vpop.f32.mrb[0].mxu0
    %v376 = vpop.f32.mrb[0].mxu0
    %v377 = vadd.f32 %v280, %v376
    %v378 = vpop.f32.mrb[0].mxu0
    %379 = vmatprep.mubr.bf16.mxu0 0
    %380 = vmatmul.mubr.bf16.gmra.mrb[0].mxu0 %v119
    %v381 = vpop.f32.mrb[0].mxu0
    %v382 = vadd.f32 %v285, %v381
    %v383 = vpop.f32.mrb[0].mxu0
    %v384 = vpop.f32.mrb[0].mxu0
    %v385 = vadd.f32 %v288, %v384
    %v386 = vpop.f32.mrb[0].mxu0
    %387 = vmatprep.mubr.bf16.mxu0 0
    %388 = vmatmul.mubr.bf16.gmra.mrb[0].mxu0 %v120
    %v389 = vpop.f32.mrb[0].mxu0
    %v390 = vadd.f32 %v293, %v389
    %v391 = vpop.f32.mrb[0].mxu0
    %v392 = vpop.f32.mrb[0].mxu0
    %v393 = vadd.f32 %v296, %v392
    %v394 = vpop.f32.mrb[0].mxu0
    %395 = vmatprep.mubr.bf16.mxu0 0
    %396 = vmatmul.mubr.bf16.gmra.mrb[0].mxu0 %v121
    %v397 = vpop.f32.mrb[0].mxu0
    %v398 = vadd.f32 %v301, %v397
    %v399 = vpop.f32.mrb[0].mxu0
    %v400 = vpop.f32.mrb[0].mxu0
    %v401 = vadd.f32 %v304, %v400
    %v402 = vpop.f32.mrb[0].mxu0
    %403 = vdwg.mxu0
    %404 = vmatprep.subr.bf16.mxu0 0
    %405 = vmatpush1.bf16.msra.mxu0 %v194
    %406 = vmatprep.subr.bf16.mxu0 0
    %407 = vmatpush1.bf16.msra.mxu0 %v195
    %408 = vmatprep.subr.bf16.mxu0 0
    %409 = vmatpush1.bf16.msra.mxu0 %v196
    %410 = vmatprep.subr.bf16.mxu0 0
    %411 = vmatpush1.bf16.msra.mxu0 %v197
    %412 = vmatprep.subr.bf16.mxu0 0
    %413 = vmatpush1.bf16.msra.mxu0 %v198
    %414 = vmatprep.subr.bf16.mxu0 0
    %415 = vmatpush1.bf16.msra.mxu0 %v199
    %416 = vmatprep.subr.bf16.mxu0 0
    %417 = vmatpush1.bf16.msra.mxu0 %v200
    %418 = vmatprep.subr.bf16.mxu0 0
    %419 = vmatpush1.bf16.msra.mxu0 %v201
    %420 = vmatprep.subr.bf16.mxu0 0
    %421 = vmatpush1.bf16.msra.mxu0 0
    %422 = vmatprep.subr.bf16.mxu0 0
    %423 = vmatpush1.bf16.msra.mxu0 0
    %424 = vmatprep.subr.bf16.mxu0 0
    %425 = vmatpush1.bf16.msra.mxu0 0
    %426 = vmatprep.subr.bf16.mxu0 0
    %427 = vmatpush1.bf16.msra.mxu0 0
    %428 = vmatprep.subr.bf16.mxu0 0
    %429 = vmatpush1.bf16.msra.mxu0 0
    %430 = vmatprep.subr.bf16.mxu0 0
    %431 = vmatpush1.bf16.msra.mxu0 0
    %432 = vmatprep.subr.bf16.mxu0 0
    %433 = vmatpush1.bf16.msra.mxu0 0
    %434 = vmatprep.subr.bf16.mxu0 0
    %435 = vmatpush1.bf16.msra.mxu0 0
    %436 = vmatprep.mubr.bf16.mxu0 0
    %437 = vmatmul.mubr.bf16.gmra.mrb[0].mxu0 %v74
    %v438 = vpop.f32.mrb[0].mxu0
    %v439 = vadd.f32 %v342, %v438
    %v440 = vpop.f32.mrb[0].mxu0
    %v441 = vpop.f32.mrb[0].mxu0
    %v442 = vadd.f32 %v345, %v441
    %v443 = vpop.f32.mrb[0].mxu0
    %444 = vmatprep.mubr.bf16.mxu0 0
    %445 = vmatmul.mubr.bf16.gmra.mrb[0].mxu0 %v75
    %v446 = vpop.f32.mrb[0].mxu0
    %v447 = vadd.f32 %v350, %v446
    %v448 = vpop.f32.mrb[0].mxu0
    %v449 = vpop.f32.mrb[0].mxu0
    %v450 = vadd.f32 %v353, %v449
    %v451 = vpop.f32.mrb[0].mxu0
    %452 = vmatprep.mubr.bf16.mxu0 0
    %453 = vmatmul.mubr.bf16.gmra.mrb[0].mxu0 %v76
    %v454 = vpop.f32.mrb[0].mxu0
    %v455 = vadd.f32 %v358, %v454
    %v456 = vpop.f32.mrb[0].mxu0
    %v457 = vpop.f32.mrb[0].mxu0
    %v458 = vadd.f32 %v361, %v457
    %v459 = vpop.f32.mrb[0].mxu0
    %460 = vmatprep.mubr.bf16.mxu0 0
    %461 = vmatmul.mubr.bf16.gmra.mrb[0].mxu0 %v77
    %v462 = vpop.f32.mrb[0].mxu0
    %v463 = vadd.f32 %v366, %v462
    %v464 = vpop.f32.mrb[0].mxu0
    %v465 = vpop.f32.mrb[0].mxu0
    %v466 = vadd.f32 %v369, %v465
    %v467 = vpop.f32.mrb[0].mxu0
    %468 = vmatprep.mubr.bf16.mxu0 0
    %469 = vmatmul.mubr.bf16.gmra.mrb[0].mxu0 %v78
    %v470 = vpop.f32.mrb[0].mxu0
    %v471 = vadd.f32 %v374, %v470
    %v472 = vpop.f32.mrb[0].mxu0
    %v473 = vpop.f32.mrb[0].mxu0
    %v474 = vadd.f32 %v377, %v473
    %v475 = vpop.f32.mrb[0].mxu0
    %476 = vmatprep.mubr.bf16.mxu0 0
    %477 = vmatmul.mubr.bf16.gmra.mrb[0].mxu0 %v79
    %v478 = vpop.f32.mrb[0].mxu0
    %v479 = vadd.f32 %v382, %v478
    %v480 = vpop.f32.mrb[0].mxu0
    %v481 = vpop.f32.mrb[0].mxu0
    %v482 = vadd.f32 %v385, %v481
    %v483 = vpop.f32.mrb[0].mxu0
    %484 = vmatprep.mubr.bf16.mxu0 0
    %485 = vmatmul.mubr.bf16.gmra.mrb[0].mxu0 %v80
    %v486 = vpop.f32.mrb[0].mxu0
    %v487 = vadd.f32 %v390, %v486
    %v488 = vpop.f32.mrb[0].mxu0
    %v489 = vpop.f32.mrb[0].mxu0
    %v490 = vadd.f32 %v393, %v489
    %v491 = vpop.f32.mrb[0].mxu0
    %492 = vmatprep.mubr.bf16.mxu0 0
    %493 = vmatmul.mubr.bf16.gmra.mrb[0].mxu0 %v81
    %v494 = vpop.f32.mrb[0].mxu0
    %v495 = vadd.f32 %v398, %v494
    %v496 = vpop.f32.mrb[0].mxu0
    %v497 = vpop.f32.mrb[0].mxu0
    %v498 = vadd.f32 %v401, %v497
    %v499 = vpop.f32.mrb[0].mxu0
    %500 = vdwg.mxu0
    %501 = vst [vmem:[#allocation7] sm:$0xff] %v439
    %502 = vst [vmem:[#allocation7 + $0x8] sm:$0xff] %v442
    %503 = vst [vmem:[#allocation7 + $0x10] sm:$0xff] %v447
    %504 = vst [vmem:[#allocation7 + $0x18] sm:$0xff] %v450
    %505 = vst [vmem:[#allocation7 + $0x20] sm:$0xff] %v455
    %506 = vst [vmem:[#allocation7 + $0x28] sm:$0xff] %v458
    %507 = vst [vmem:[#allocation7 + $0x30] sm:$0xff] %v463
    %508 = vst [vmem:[#allocation7 + $0x38] sm:$0xff] %v466
    %509 = vst [vmem:[#allocation7 + $0x40] sm:$0xff] %v471
    %510 = vst [vmem:[#allocation7 + $0x48] sm:$0xff] %v474
    %511 = vst [vmem:[#allocation7 + $0x50] sm:$0xff] %v479
    %512 = vst [vmem:[#allocation7 + $0x58] sm:$0xff] %v482
    %513 = vst [vmem:[#allocation7 + $0x60] sm:$0xff] %v487
    %514 = vst [vmem:[#allocation7 + $0x68] sm:$0xff] %v490
    %515 = vst [vmem:[#allocation7 + $0x70] sm:$0xff] %v495
    %516 = vst [vmem:[#allocation7 + $0x78] sm:$0xff] %v498
    // Predicated region
    $region18: #{tpu_custom_call.1} parent=1 // pred_check
      _
    $region19: #{tpu_custom_call.1} parent=1 // pred_check_branch
      %518 = sbr.rel (0) target = $region21
    $region20: #{tpu_custom_call.1} parent=1 // pred_region
      %s519 = ssub.s32 0, 0
      %s521 = ssub.s32 2048, 2048
      %522 = vsyncadd [#allocation4], %s521
      %s523 = smul.addr %s519, 128
      %s524 = scalar_lea.hbm %s2, %s523
      %s525 = sshll.u32 [#allocation7], 4
      %s526 = int_to_ptr.vmem [resolvable:$true] %s525
      %531 = dma.vmem_to_hbm [thread:$0]  %s526, 2048, %s524, [#allocation4], 128, 128, 8
    $region21: #{tpu_custom_call.1} parent=1 // pred_fallthru
      _
    // Predicated region
    $region22: #{tpu_custom_call.1} parent=1 // pred_check
      _
    $region23: #{tpu_custom_call.1} parent=1 // pred_check_branch
      %533 = sbr.rel (0) target = $region25
    $region24: #{tpu_custom_call.1} parent=1 // pred_region
      %534 = dma.done [#allocation4], 2048
    $region25: #{tpu_custom_call.1} parent=1 // pred_fallthru
      _
    %535 = vsyncpa [#allocation3], 1
    %536 = vsyncpa [#allocation6], 1
    %537 = vsyncpa [#allocation4], 1

</llo_original>
